<compile_context>
chip_gen: v7x
topology: tpu7x:2x2x1
jax: 0.10.0
libtpu: 0.0.40
codegen_flags: <defaults>
</compile_context>

<pallas_src>
import numpy as np
import jax
import jax.numpy as jnp
from jax import lax
from jax.experimental import pallas as pl
from jax.experimental.pallas import tpu as pltpu

_SQRT2 = 1.4142135623730951


def _gelu(x):
    # exact (erf-based) GELU, matching torch.nn.GELU() default
    return 0.5 * x * (1.0 + lax.erf(x / _SQRT2))


# ----------------------------- kernel ---------------------------------------
def make_solver_kernel(*, D, H, M):
    """Kernel over a flat (M, D) batch slab (M = Tb * L rows).

    Packed weight-stack layout (index -> logical shape):
      0: Wdu1 (D, 2H)   1: Wdu2 (2H, 2H)   2: Wdu3 (2H, 2D)   [fused dudt|u MLP]
      3: Wi1  (D, H)    4: Wi2  (H, H)     5: Wi3  (H, D)     [integrate MLP]
    """

    def kernel(x_ref, g_ref, w_ref, b_ref, out_ref):
        # Hoisted static *ref* slices (free) -> materialized once per grid step.
        Wdu1 = w_ref[0, :D, :2 * H]
        Wdu2 = w_ref[1, :2 * H, :2 * H]
        Wdu3 = w_ref[2, :2 * H, :2 * D]
        Wi1 = w_ref[3, :D, :H]
        Wi2 = w_ref[4, :H, :H]
        Wi3 = w_ref[5, :H, :D]
        bdu1 = b_ref[0:1, :2 * H]
        bdu2 = b_ref[1:2, :2 * H]
        bdu3 = b_ref[2:3, :2 * D]
        bi1 = b_ref[3:4, :H]
        bi2 = b_ref[4:5, :H]
        bi3 = b_ref[5:6, :D]

        def dense(h, W, b):
            return _gelu(jnp.dot(h, W, preferred_element_type=jnp.float32) + b)

        x = x_ref[...]                                   # (M, D)

        # Fused dudt/u MLP: output cols [0:D] = dudt branch (pre-negation),
        # cols [D:2D] = u branch.  3 MXU dispatches instead of 6.
        h = dense(x, Wdu1, bdu1)
        h = dense(h, Wdu2, bdu2)
        h = dense(h, Wdu3, bdu3)                         # (M, 2D)

        # Integration for the whole slab in ONE MXU dispatch:
        #   intdudt = A_u @ u - A_d @ d   (dudt = -d; sign folded into subtract)
        g = jnp.dot(g_ref[...], h, preferred_element_type=jnp.float32)  # (2M, 2D)
        intdudt = g[:M, D:] - g[M:, :D]                  # (M, D)

        # integrate MLP
        y = dense(intdudt, Wi1, bi1)
        y = dense(y, Wi2, bi2)
        y = dense(y, Wi3, bi3)
        out_ref[...] = y                                 # D=32 -> masked stores;
                                                         # negligible at these sizes.
    return kernel


# ----------------------------- wrapper ---------------------------------------
def make_integration_matrices(M, S):
    """Selection matrices for the per-patch flip/cumsum/flip on a flat slab of
    M rows.  Patches are consecutive groups of S rows; for M = Tb*L with
    L % S == 0 this equals the block-diagonal (per batch row) construction,
    since patches never cross an L boundary."""
    idx = np.arange(M)
    patch = idx // S
    pos = idx % S
    A_u = np.zeros((M, M), np.float32)
    A_u[idx, patch * S + (S - 1)] = 1.0                  # pick last-of-patch u
    A_d = ((patch[:, None] == patch[None, :]) &
           (pos[None, :] > pos[:, None])).astype(np.float32)  # later-in-patch sum
    return A_u, A_d


def _block_diag2(a, b):
    r0, c0 = a.shape
    r1, c1 = b.shape
    top = jnp.concatenate([a, jnp.zeros((r0, c1), a.dtype)], axis=1)
    bot = jnp.concatenate([jnp.zeros((r1, c0), b.dtype), b], axis=1)
    return jnp.concatenate([top, bot], axis=0)


def _pad2(a, r, c):
    return jnp.pad(a, ((0, r - a.shape[0]), (0, c - a.shape[1])))


def _pick_batch_block(B, L, *, target_rows=512, min_grid=2):
    """Largest Tb with Tb*L <= target_rows (tall M for the MXU), but keeping at
    least `min_grid` grid steps when B > 1 so the batch axis can shard across
    v7x's two TensorCores.  Non-divisor B is handled by padding in the caller."""
    tb = max(1, min(B, target_rows // L))
    if B > 1:
        tb = min(tb, -(-B // min_grid))      # ceil(B / min_grid)
    return tb


def solver_forward(tau, params, S, *, batch_block=None, target_rows=512):
    """tau: (B, L, D) f32.  params: flat list of 18 arrays
    (mlp_dudt + mlp_u + mlp_integrate, each [w1,b1,w2,b2,w3,b3])."""
    B, L, D = tau.shape
    H = params[0].shape[1]

    dw1, db1, dw2, db2, dw3, db3 = params[0:6]
    uw1, ub1, uw2, ub2, uw3, ub3 = params[6:12]
    iw1, ib1, iw2, ib2, iw3, ib3 = params[12:18]

    # --- fuse dudt/u MLPs (done once, wrapper-side) ---
    Wdu1 = jnp.concatenate([dw1, uw1], axis=1)        # (D, 2H)
    Wdu2 = _block_diag2(dw2, uw2)                     # (2H, 2H)
    Wdu3 = _block_diag2(dw3, uw3)                     # (2H, 2D)
    bdu1 = jnp.concatenate([db1, ub1], axis=1)        # (1, 2H)
    bdu2 = jnp.concatenate([db2, ub2], axis=1)        # (1, 2H)
    bdu3 = jnp.concatenate([db3, ub3], axis=1)        # (1, 2D)

    weights = [Wdu1, Wdu2, Wdu3, iw1, iw2, iw3]
    biases = [bdu1, bdu2, bdu3, ib1, ib2, ib3]
    RW = max(w.shape[0] for w in weights)
    CW = max(w.shape[1] for w in weights)
    w_pack = jnp.stack([_pad2(w, RW, CW) for w in weights], axis=0)       # (6,RW,CW)
    b_pack = jnp.concatenate([_pad2(b, 1, CW) for b in biases], axis=0)   # (6,CW)

    Tb = (_pick_batch_block(B, L, target_rows=target_rows)
          if batch_block is None else batch_block)
    grid_n = -(-B // Tb)                               # ceil
    Bp = grid_n * Tb
    if Bp != B:                                        # prime / non-divisor B: pad
        tau = jnp.concatenate(
            [tau, jnp.zeros((Bp - B, L, D), tau.dtype)], axis=0)

    M = Tb * L                                          # rows per grid step
    A_u, A_d = make_integration_matrices(M, S)
    G = jnp.asarray(np.concatenate([A_u, A_d], axis=0))  # (2M, M) = [A_u; A_d]

    x2d = tau.reshape(Bp * L, D)
    kernel = make_solver_kernel(D=D, H=H, M=M)

    out2d = pl.pallas_call(
        kernel,
        out_shape=jax.ShapeDtypeStruct((Bp * L, D), jnp.float32),
        grid_spec=pltpu.PrefetchScalarGridSpec(
            num_scalar_prefetch=0,
            grid=(grid_n,),
            in_specs=[
                pl.BlockSpec((M, D), lambda i: (i, 0)),          # tau slab
                pl.BlockSpec((2 * M, M), lambda i: (0, 0)),      # G (index const -> fetched once)
                pl.BlockSpec((6, RW, CW), lambda i: (0, 0, 0)),  # packed weights
                pl.BlockSpec((6, CW), lambda i: (0, 0)),         # packed biases
            ],
            out_specs=pl.BlockSpec((M, D), lambda i: (i, 0)),
        ),
        compiler_params=pltpu.CompilerParams(
            dimension_semantics=("parallel",),       # shard batch blocks across TCs (v7x)
            vmem_limit_bytes=32 * 1024 * 1024,       # safe on v5e/v6e/v7x
        ),
    )(x2d, G, w_pack, b_pack)
    return out2d[:B * L].reshape(B, L, D)


# ---------------- pure-JAX reference (mirrors the torch code) ----------------
def _mlp_ref(x, p):
    w1, b1, w2, b2, w3, b3 = p
    h = _gelu(x @ w1 + b1)
    h = _gelu(h @ w2 + b2)
    return _gelu(h @ w3 + b3)


def solver_reference(tau, params, L, S, D):
    p_dudt, p_u, p_int = params[0:6], params[6:12], params[12:18]
    B = tau.shape[0]
    dudt = -_mlp_ref(tau, p_dudt)
    u = _mlp_ref(tau, p_u)
    u = u.reshape(B, -1, S, D)
    dudt = dudt.reshape(B, -1, S, D)
    dudt = jnp.flip(dudt, axis=2)[:, :, :-1, :]
    dudt = jnp.concatenate([u[:, :, -1:, :], dudt], axis=2)
    intdudt = jnp.cumsum(dudt, axis=2)
    intdudt = jnp.flip(intdudt, axis=2).reshape(B, L, D)
    return _mlp_ref(intdudt, p_int)


if __name__ == "__main__":
    # small shapes consistent with the module
    B = 2                 # batch
    L = 16                # window_length (lookback + horizon)
    D = 32                # latent_features
    S = 4                 # patch_length (L % S == 0)
    H = 32                # MLP_hidden_features (hidden_layers = 2)

    key = jax.random.PRNGKey(0)

    def init_mlp(key, din, dh, dout):
        ks = jax.random.split(key, 6)
        return [
            jax.random.normal(ks[0], (din, dh), jnp.float32) * 0.1,
            jax.random.normal(ks[1], (1, dh), jnp.float32) * 0.1,
            jax.random.normal(ks[2], (dh, dh), jnp.float32) * 0.1,
            jax.random.normal(ks[3], (1, dh), jnp.float32) * 0.1,
            jax.random.normal(ks[4], (dh, dout), jnp.float32) * 0.1,
            jax.random.normal(ks[5], (1, dout), jnp.float32) * 0.1,
        ]

    k_tau, k_d, k_u, k_i = jax.random.split(key, 4)
    tau = jax.random.normal(k_tau, (B, L, D), jnp.float32)
    params = (init_mlp(k_d, D, H, D)      # mlp_dudt
              + init_mlp(k_u, D, H, D)    # mlp_u
              + init_mlp(k_i, D, H, D))   # mlp_integrate

    out = solver_forward(tau, params, S)
    out = jax.block_until_ready(out)

    ref = solver_reference(tau, params, L, S, D)
    # Tolerance: default MXU dot precision uses bf16 passes for f32 operands in
    # the kernel's matmul-based integration, while the reference integrates via
    # an exact f32 cumsum -> differences up to ~1e-3.
    np.testing.assert_allclose(np.asarray(out), np.asarray(ref),
                               rtol=1e-2, atol=1e-2)
    print("KERNEL_OK")
</pallas_src>

<mosaic_0001>
module attributes {stable_mosaic.version = 11 : i64} {
  func.func @kernel(%arg0: i32, %arg1: memref<16x32xf32, #tpu.memory_space<vmem>>, %arg2: memref<32x16xf32, #tpu.memory_space<vmem>>, %arg3: memref<6x64x64xf32, #tpu.memory_space<vmem>>, %arg4: memref<6x64xf32, #tpu.memory_space<vmem>>, %arg5: memref<16x32xf32, #tpu.memory_space<vmem>>) attributes {dimension_semantics = [#tpu.dimension_semantics<parallel>], iteration_bounds = array<i64: 2>, scalar_prefetch = 0 : i64, scratch_operands = 0 : i64, tpu.core_type = #tpu.core_type<tc>, window_params = [{transform_indices = @transform_0, window_bounds = array<i64: 16, 32>}, {pipeline_mode = #tpu.pipeline_mode<synchronous>, transform_indices = @transform_1, window_bounds = array<i64: 32, 16>}, {pipeline_mode = #tpu.pipeline_mode<synchronous>, transform_indices = @transform_2, window_bounds = array<i64: 6, 64, 64>}, {pipeline_mode = #tpu.pipeline_mode<synchronous>, transform_indices = @transform_3, window_bounds = array<i64: 6, 64>}, {transform_indices = @transform_4, window_bounds = array<i64: 16, 32>}]} {
    %c0 = arith.constant 0 : index
    %c0_0 = arith.constant 0 : index
    %c0_1 = arith.constant 0 : index
    %0 = vector.load %arg3[%c0, %c0_0, %c0_1] : memref<6x64x64xf32, #tpu.memory_space<vmem>>, vector<1x32x64xf32>
    %1 = vector.shape_cast %0 : vector<1x32x64xf32> to vector<32x64xf32>
    %c1 = arith.constant 1 : index
    %c0_2 = arith.constant 0 : index
    %c0_3 = arith.constant 0 : index
    %2 = vector.load %arg3[%c1, %c0_2, %c0_3] : memref<6x64x64xf32, #tpu.memory_space<vmem>>, vector<1x64x64xf32>
    %3 = vector.shape_cast %2 : vector<1x64x64xf32> to vector<64x64xf32>
    %c2 = arith.constant 2 : index
    %c0_4 = arith.constant 0 : index
    %c0_5 = arith.constant 0 : index
    %4 = vector.load %arg3[%c2, %c0_4, %c0_5] : memref<6x64x64xf32, #tpu.memory_space<vmem>>, vector<1x64x64xf32>
    %5 = vector.shape_cast %4 : vector<1x64x64xf32> to vector<64x64xf32>
    %c3 = arith.constant 3 : index
    %c0_6 = arith.constant 0 : index
    %c0_7 = arith.constant 0 : index
    %6 = vector.load %arg3[%c3, %c0_6, %c0_7] : memref<6x64x64xf32, #tpu.memory_space<vmem>>, vector<1x32x32xf32>
    %7 = vector.shape_cast %6 : vector<1x32x32xf32> to vector<32x32xf32>
    %c4 = arith.constant 4 : index
    %c0_8 = arith.constant 0 : index
    %c0_9 = arith.constant 0 : index
    %8 = vector.load %arg3[%c4, %c0_8, %c0_9] : memref<6x64x64xf32, #tpu.memory_space<vmem>>, vector<1x32x32xf32>
    %9 = vector.shape_cast %8 : vector<1x32x32xf32> to vector<32x32xf32>
    %c5 = arith.constant 5 : index
    %c0_10 = arith.constant 0 : index
    %c0_11 = arith.constant 0 : index
    %10 = vector.load %arg3[%c5, %c0_10, %c0_11] : memref<6x64x64xf32, #tpu.memory_space<vmem>>, vector<1x32x32xf32>
    %11 = vector.shape_cast %10 : vector<1x32x32xf32> to vector<32x32xf32>
    %c0_12 = arith.constant 0 : index
    %c0_13 = arith.constant 0 : index
    %12 = vector.load %arg4[%c0_12, %c0_13] : memref<6x64xf32, #tpu.memory_space<vmem>>, vector<1x64xf32>
    %c1_14 = arith.constant 1 : index
    %c0_15 = arith.constant 0 : index
    %13 = vector.load %arg4[%c1_14, %c0_15] : memref<6x64xf32, #tpu.memory_space<vmem>>, vector<1x64xf32>
    %c2_16 = arith.constant 2 : index
    %c0_17 = arith.constant 0 : index
    %14 = vector.load %arg4[%c2_16, %c0_17] : memref<6x64xf32, #tpu.memory_space<vmem>>, vector<1x64xf32>
    %c3_18 = arith.constant 3 : index
    %c0_19 = arith.constant 0 : index
    %15 = vector.load %arg4[%c3_18, %c0_19] : memref<6x64xf32, #tpu.memory_space<vmem>>, vector<1x32xf32>
    %c4_20 = arith.constant 4 : index
    %c0_21 = arith.constant 0 : index
    %16 = vector.load %arg4[%c4_20, %c0_21] : memref<6x64xf32, #tpu.memory_space<vmem>>, vector<1x32xf32>
    %c5_22 = arith.constant 5 : index
    %c0_23 = arith.constant 0 : index
    %17 = vector.load %arg4[%c5_22, %c0_23] : memref<6x64xf32, #tpu.memory_space<vmem>>, vector<1x32xf32>
    %c0_24 = arith.constant 0 : index
    %c0_25 = arith.constant 0 : index
    %18 = vector.load %arg1[%c0_24, %c0_25] : memref<16x32xf32, #tpu.memory_space<vmem>>, vector<16x32xf32>
    %cst = arith.constant dense<0.000000e+00> : vector<16x64xf32>
    %19 = tpu.matmul %18, %1, %cst {dimension_numbers = #tpu.dot_dimension_numbers<[1], [0], [0], [1], [0, 0, 1, 1], [], []>} : vector<16x32xf32>, vector<32x64xf32>, vector<16x64xf32> -> vector<16x64xf32>
    %20 = vector.broadcast %12 : vector<1x64xf32> to vector<16x64xf32>
    %21 = arith.addf %19, %20 : vector<16x64xf32>
    %cst_26 = arith.constant 5.000000e-01 : f32
    %22 = vector.broadcast %cst_26 : f32 to vector<16x64xf32>
    %23 = arith.mulf %22, %21 : vector<16x64xf32>
    %cst_27 = arith.constant 1.41421354 : f32
    %24 = vector.broadcast %cst_27 : f32 to vector<16x64xf32>
    %25 = arith.divf %21, %24 : vector<16x64xf32>
    %26 = math.erf %25 : vector<16x64xf32>
    %cst_28 = arith.constant 1.000000e+00 : f32
    %27 = vector.broadcast %cst_28 : f32 to vector<16x64xf32>
    %28 = arith.addf %27, %26 : vector<16x64xf32>
    %29 = arith.mulf %23, %28 : vector<16x64xf32>
    %cst_29 = arith.constant dense<0.000000e+00> : vector<16x64xf32>
    %30 = tpu.matmul %29, %3, %cst_29 {dimension_numbers = #tpu.dot_dimension_numbers<[1], [0], [0], [1], [0, 0, 1, 1], [], []>} : vector<16x64xf32>, vector<64x64xf32>, vector<16x64xf32> -> vector<16x64xf32>
    %31 = vector.broadcast %13 : vector<1x64xf32> to vector<16x64xf32>
    %32 = arith.addf %30, %31 : vector<16x64xf32>
    %cst_30 = arith.constant 5.000000e-01 : f32
    %33 = vector.broadcast %cst_30 : f32 to vector<16x64xf32>
    %34 = arith.mulf %33, %32 : vector<16x64xf32>
    %cst_31 = arith.constant 1.41421354 : f32
    %35 = vector.broadcast %cst_31 : f32 to vector<16x64xf32>
    %36 = arith.divf %32, %35 : vector<16x64xf32>
    %37 = math.erf %36 : vector<16x64xf32>
    %cst_32 = arith.constant 1.000000e+00 : f32
    %38 = vector.broadcast %cst_32 : f32 to vector<16x64xf32>
    %39 = arith.addf %38, %37 : vector<16x64xf32>
    %40 = arith.mulf %34, %39 : vector<16x64xf32>
    %cst_33 = arith.constant dense<0.000000e+00> : vector<16x64xf32>
    %41 = tpu.matmul %40, %5, %cst_33 {dimension_numbers = #tpu.dot_dimension_numbers<[1], [0], [0], [1], [0, 0, 1, 1], [], []>} : vector<16x64xf32>, vector<64x64xf32>, vector<16x64xf32> -> vector<16x64xf32>
    %42 = vector.broadcast %14 : vector<1x64xf32> to vector<16x64xf32>
    %43 = arith.addf %41, %42 : vector<16x64xf32>
    %cst_34 = arith.constant 5.000000e-01 : f32
    %44 = vector.broadcast %cst_34 : f32 to vector<16x64xf32>
    %45 = arith.mulf %44, %43 : vector<16x64xf32>
    %cst_35 = arith.constant 1.41421354 : f32
    %46 = vector.broadcast %cst_35 : f32 to vector<16x64xf32>
    %47 = arith.divf %43, %46 : vector<16x64xf32>
    %48 = math.erf %47 : vector<16x64xf32>
    %cst_36 = arith.constant 1.000000e+00 : f32
    %49 = vector.broadcast %cst_36 : f32 to vector<16x64xf32>
    %50 = arith.addf %49, %48 : vector<16x64xf32>
    %51 = arith.mulf %45, %50 : vector<16x64xf32>
    %c0_37 = arith.constant 0 : index
    %c0_38 = arith.constant 0 : index
    %52 = vector.load %arg2[%c0_37, %c0_38] : memref<32x16xf32, #tpu.memory_space<vmem>>, vector<32x16xf32>
    %cst_39 = arith.constant dense<0.000000e+00> : vector<32x64xf32>
    %53 = tpu.matmul %52, %51, %cst_39 {dimension_numbers = #tpu.dot_dimension_numbers<[1], [0], [0], [1], [0, 0, 1, 1], [], []>} : vector<32x16xf32>, vector<16x64xf32>, vector<32x64xf32> -> vector<32x64xf32>
    %54 = vector.extract_strided_slice %53 {offsets = [0, 32], sizes = [16, 32], strides = [1, 1]} : vector<32x64xf32> to vector<16x32xf32>
    %55 = vector.extract_strided_slice %53 {offsets = [16, 0], sizes = [16, 32], strides = [1, 1]} : vector<32x64xf32> to vector<16x32xf32>
    %56 = arith.subf %54, %55 : vector<16x32xf32>
    %cst_40 = arith.constant dense<0.000000e+00> : vector<16x32xf32>
    %57 = tpu.matmul %56, %7, %cst_40 {dimension_numbers = #tpu.dot_dimension_numbers<[1], [0], [0], [1], [0, 0, 1, 1], [], []>} : vector<16x32xf32>, vector<32x32xf32>, vector<16x32xf32> -> vector<16x32xf32>
    %58 = vector.broadcast %15 : vector<1x32xf32> to vector<16x32xf32>
    %59 = arith.addf %57, %58 : vector<16x32xf32>
    %cst_41 = arith.constant 5.000000e-01 : f32
    %60 = vector.broadcast %cst_41 : f32 to vector<16x32xf32>
    %61 = arith.mulf %60, %59 : vector<16x32xf32>
    %cst_42 = arith.constant 1.41421354 : f32
    %62 = vector.broadcast %cst_42 : f32 to vector<16x32xf32>
    %63 = arith.divf %59, %62 : vector<16x32xf32>
    %64 = math.erf %63 : vector<16x32xf32>
    %cst_43 = arith.constant 1.000000e+00 : f32
    %65 = vector.broadcast %cst_43 : f32 to vector<16x32xf32>
    %66 = arith.addf %65, %64 : vector<16x32xf32>
    %67 = arith.mulf %61, %66 : vector<16x32xf32>
    %cst_44 = arith.constant dense<0.000000e+00> : vector<16x32xf32>
    %68 = tpu.matmul %67, %9, %cst_44 {dimension_numbers = #tpu.dot_dimension_numbers<[1], [0], [0], [1], [0, 0, 1, 1], [], []>} : vector<16x32xf32>, vector<32x32xf32>, vector<16x32xf32> -> vector<16x32xf32>
    %69 = vector.broadcast %16 : vector<1x32xf32> to vector<16x32xf32>
    %70 = arith.addf %68, %69 : vector<16x32xf32>
    %cst_45 = arith.constant 5.000000e-01 : f32
    %71 = vector.broadcast %cst_45 : f32 to vector<16x32xf32>
    %72 = arith.mulf %71, %70 : vector<16x32xf32>
    %cst_46 = arith.constant 1.41421354 : f32
    %73 = vector.broadcast %cst_46 : f32 to vector<16x32xf32>
    %74 = arith.divf %70, %73 : vector<16x32xf32>
    %75 = math.erf %74 : vector<16x32xf32>
    %cst_47 = arith.constant 1.000000e+00 : f32
    %76 = vector.broadcast %cst_47 : f32 to vector<16x32xf32>
    %77 = arith.addf %76, %75 : vector<16x32xf32>
    %78 = arith.mulf %72, %77 : vector<16x32xf32>
    %cst_48 = arith.constant dense<0.000000e+00> : vector<16x32xf32>
    %79 = tpu.matmul %78, %11, %cst_48 {dimension_numbers = #tpu.dot_dimension_numbers<[1], [0], [0], [1], [0, 0, 1, 1], [], []>} : vector<16x32xf32>, vector<32x32xf32>, vector<16x32xf32> -> vector<16x32xf32>
    %80 = vector.broadcast %17 : vector<1x32xf32> to vector<16x32xf32>
    %81 = arith.addf %79, %80 : vector<16x32xf32>
    %cst_49 = arith.constant 5.000000e-01 : f32
    %82 = vector.broadcast %cst_49 : f32 to vector<16x32xf32>
    %83 = arith.mulf %82, %81 : vector<16x32xf32>
    %cst_50 = arith.constant 1.41421354 : f32
    %84 = vector.broadcast %cst_50 : f32 to vector<16x32xf32>
    %85 = arith.divf %81, %84 : vector<16x32xf32>
    %86 = math.erf %85 : vector<16x32xf32>
    %cst_51 = arith.constant 1.000000e+00 : f32
    %87 = vector.broadcast %cst_51 : f32 to vector<16x32xf32>
    %88 = arith.addf %87, %86 : vector<16x32xf32>
    %89 = arith.mulf %83, %88 : vector<16x32xf32>
    %c0_52 = arith.constant 0 : index
    %c0_53 = arith.constant 0 : index
    %90 = vector.load %arg5[%c0_52, %c0_53] : memref<16x32xf32, #tpu.memory_space<vmem>>, vector<16x32xf32>
    tpu.vector_store %arg5[%c0_52, %c0_53], %89 {strides = array<i32>} : memref<16x32xf32, #tpu.memory_space<vmem>>, vector<16x32xf32>,
    return
  }
  func.func @transform_0(%arg0: i32) -> (i32, i32) {
    %c0_i32 = arith.constant 0 : i32
    %c0_i32_0 = arith.constant 0 : i32
    return %arg0, %c0_i32 : i32, i32
  }
  func.func @transform_1(%arg0: i32) -> (i32, i32) {
    %c0_i32 = arith.constant 0 : i32
    %c0_i32_0 = arith.constant 0 : i32
    %c0_i32_1 = arith.constant 0 : i32
    return %c0_i32, %c0_i32_0 : i32, i32
  }
  func.func @transform_2(%arg0: i32) -> (i32, i32, i32) {
    %c0_i32 = arith.constant 0 : i32
    %c0_i32_0 = arith.constant 0 : i32
    %c0_i32_1 = arith.constant 0 : i32
    %c0_i32_2 = arith.constant 0 : i32
    return %c0_i32, %c0_i32_0, %c0_i32_1 : i32, i32, i32
  }
  func.func @transform_3(%arg0: i32) -> (i32, i32) {
    %c0_i32 = arith.constant 0 : i32
    %c0_i32_0 = arith.constant 0 : i32
    %c0_i32_1 = arith.constant 0 : i32
    return %c0_i32, %c0_i32_0 : i32, i32
  }
  func.func @transform_4(%arg0: i32) -> (i32, i32) {
    %c0_i32 = arith.constant 0 : i32
    %c0_i32_0 = arith.constant 0 : i32
    return %arg0, %c0_i32 : i32, i32
  }
}

</mosaic_0001>

<llo_original>
// kernel: tpu_custom_call.1
$region0: #{tpu_custom_call.1}
  #allocation0 [shape = 'u32[]', space=smem, size = 0x4, offset = 0x4, fixed_abs, tag = 'smem constant byte address 0x4 - core index']
  #allocation1 [shape = 'u32[144,128]{1,0:T(1,128)}', space=vmem, size = 0x12000, scoped, tag = 'internal scratch']
  %s0 = inlined_call_operand.vmem [shape: f32[32,32], index: 0, kind: input, shape index: {}]
  %s1 = inlined_call_operand.vmem [shape: f32[32,16], index: 1, kind: input, shape index: {}]
  %s2 = inlined_call_operand.hbm [shape: f32[6,64,64], index: 2, kind: input, shape index: {}]
  %s3 = inlined_call_operand.vmem [shape: f32[6,64], index: 3, kind: input, shape index: {}]
  %s4 = inlined_call_operand.hbm [shape: f32[32,32], index: 4, kind: output, shape index: {}]
  %s5 = sld [smem:[#allocation0]]
  $region53: #{tpu_custom_call.1} parent=0
    _
  %s7 = ssub.s32 1, %s5
  %s8 = scalar_select 0, %s7, %s5
  $region1: #{tpu_custom_call.1} parent=0
    #allocation2 [shape = 'u8[196608]{0}', space=vmem, size = 0x30000, scoped, tag = 'input window, operand 2, single buffered']
    #allocation3 [shape = 's32[2]{0}', space=sflag, size = 0x8, scoped, tag = 'scoped memory for tpu_custom_call.1']
    #allocation4 [shape = 's32[2]{0}', space=sflag, size = 0x8, scoped, tag = 'scoped memory for tpu_custom_call.1']
    #allocation5 [shape = 'u8[16384]{0}', space=vmem, size = 0x4000, scoped, tag = 'output window, operand 0']
    %9 = vsyncpa [#allocation3], 0
    %10 = vsyncpa [#allocation4], 0
    %s11 = scalar_lea.sflag [#allocation4], 1
    %12 = vsyncpa %s11, 0
    loop: start=0, step=1, limit=4
    $region2: #{tpu_custom_call.1} parent=1 // loop_pre_header
      _
    $region3: #{tpu_custom_call.1} parent=1 // loop_header
      %s14 = sphi 0, %s18
      %p15 = scmp.ge.s32.totalorder %s14, 4
      %s24 = sphi 0, %s26
      %s27 = sphi 0, %s24
      %s28 = sphi 0, %s27
      %s44 = sphi 0, %s28
      %s48 = sphi 0, %s48
      %s50 = sphi 0, %s48
      %s51 = sphi 0, %s50
      %s65 = sphi 0, %s51
      %s69 = sphi 0, %s69
      %s71 = sphi 0, %s69
      %s72 = sphi 0, %s71
      %s86 = sphi 0, %s72
      %s90 = sphi 0, %s90
      %s92 = sphi 0, %s90
      %s93 = sphi 0, %s92
      %s107 = sphi 0, %s93
      %s113 = sphi 0, %s115
      %s116 = sphi 0, %s113
      %s117 = sphi 0, %s116
      %s133 = sphi 0, %s117
    $region4: #{tpu_custom_call.1} parent=1 // loop_header_branch
      %17 = sbr.rel (%p15) target = $region8
    $region5: #{tpu_custom_call.1} parent=1 // loop_body
      %s19 = ssub.s32 %s14, 1
      %s20 = ssub.s32 %s14, 2
      %s21 = sadd.s32 %s14, 1
      %s22 = ssub.s32 %s14, %s21
      %p23 = scmp.eq.s32.totalorder %s22, 0
      %s25 = sadd.s32 %s24, 1
      %s26 = scalar_select %p23, %s24, %s25
      %p29 = pneg %p23
      %p30 = scmp.eq.s32.totalorder %s14, 1
      %p31 = por %p29, %p30
      %p32 = scmp.ne.s32.totalorder %s24, %s27
      %p33 = scmp.eq.s32.totalorder %s14, 0
      %p34 = por %p32, %p33
      %p35 = scmp.ne.s32.totalorder %s24, %s27
      %p36 = scmp.eq.s32.totalorder %s19, 1
      %p37 = por %p35, %p36
      %p38 = scmp.ne.s32.totalorder %s27, %s28
      %p39 = scmp.eq.s32.totalorder %s19, 0
      %p40 = por %p38, %p39
      %p41 = scmp.ne.s32.totalorder %s27, %s28
      %p42 = scmp.eq.s32.totalorder %s20, 1
      %p43 = por %p41, %p42
      %p45 = scmp.ne.s32.totalorder %s28, %s44
      %p46 = scmp.eq.s32.totalorder %s20, 0
      %p47 = por %p45, %p46
      %s49 = sadd.s32 %s48, 1
      %p52 = scmp.eq.s32.totalorder %s14, 1
      %p53 = scmp.ne.s32.totalorder %s48, %s50
      %p54 = scmp.eq.s32.totalorder %s14, 0
      %p55 = por %p53, %p54
      %p56 = scmp.ne.s32.totalorder %s48, %s50
      %p57 = scmp.eq.s32.totalorder %s19, 1
      %p58 = por %p56, %p57
      %p59 = scmp.ne.s32.totalorder %s50, %s51
      %p60 = scmp.eq.s32.totalorder %s19, 0
      %p61 = por %p59, %p60
      %p62 = scmp.ne.s32.totalorder %s50, %s51
      %p63 = scmp.eq.s32.totalorder %s20, 1
      %p64 = por %p62, %p63
      %p66 = scmp.ne.s32.totalorder %s51, %s65
      %p67 = scmp.eq.s32.totalorder %s20, 0
      %p68 = por %p66, %p67
      %s70 = sadd.s32 %s69, 1
      %p73 = scmp.eq.s32.totalorder %s14, 1
      %p74 = scmp.ne.s32.totalorder %s69, %s71
      %p75 = scmp.eq.s32.totalorder %s14, 0
      %p76 = por %p74, %p75
      %p77 = scmp.ne.s32.totalorder %s69, %s71
      %p78 = scmp.eq.s32.totalorder %s19, 1
      %p79 = por %p77, %p78
      %p80 = scmp.ne.s32.totalorder %s71, %s72
      %p81 = scmp.eq.s32.totalorder %s19, 0
      %p82 = por %p80, %p81
      %p83 = scmp.ne.s32.totalorder %s71, %s72
      %p84 = scmp.eq.s32.totalorder %s20, 1
      %p85 = por %p83, %p84
      %p87 = scmp.ne.s32.totalorder %s72, %s86
      %p88 = scmp.eq.s32.totalorder %s20, 0
      %p89 = por %p87, %p88
      %s91 = sadd.s32 %s90, 1
      %p94 = scmp.eq.s32.totalorder %s14, 1
      %p95 = scmp.ne.s32.totalorder %s90, %s92
      %p96 = scmp.eq.s32.totalorder %s14, 0
      %p97 = por %p95, %p96
      %p98 = scmp.ne.s32.totalorder %s90, %s92
      %p99 = scmp.eq.s32.totalorder %s19, 1
      %p100 = por %p98, %p99
      %p101 = scmp.ne.s32.totalorder %s92, %s93
      %p102 = scmp.eq.s32.totalorder %s19, 0
      %p103 = por %p101, %p102
      %p104 = scmp.ne.s32.totalorder %s92, %s93
      %p105 = scmp.eq.s32.totalorder %s20, 1
      %p106 = por %p104, %p105
      %p108 = scmp.ne.s32.totalorder %s93, %s107
      %p109 = scmp.eq.s32.totalorder %s20, 0
      %p110 = por %p108, %p109
      %s111 = ssub.s32 %s14, %s21
      %p112 = scmp.eq.s32.totalorder %s111, 0
      %s114 = sadd.s32 %s113, 1
      %s115 = scalar_select %p112, %s113, %s114
      %p118 = pneg %p112
      %p119 = scmp.eq.s32.totalorder %s14, 1
      %p120 = por %p118, %p119
      %p121 = scmp.ne.s32.totalorder %s113, %s116
      %p122 = scmp.eq.s32.totalorder %s14, 0
      %p123 = por %p121, %p122
      %p124 = scmp.ne.s32.totalorder %s113, %s116
      %p125 = scmp.eq.s32.totalorder %s19, 1
      %p126 = por %p124, %p125
      %p127 = scmp.ne.s32.totalorder %s116, %s117
      %p128 = scmp.eq.s32.totalorder %s19, 0
      %p129 = por %p127, %p128
      %p130 = scmp.ne.s32.totalorder %s116, %s117
      %p131 = scmp.eq.s32.totalorder %s20, 1
      %p132 = por %p130, %p131
      %p134 = scmp.ne.s32.totalorder %s117, %s133
      %p135 = scmp.eq.s32.totalorder %s20, 0
      %p136 = por %p134, %p135
      %p137 = scmp.le.s32.totalorder 1, %s14
      %p138 = scmp.lt.s32.totalorder %s14, 3
      %p139 = pnand %p137, %p138
      %p140 = pneg %p139
      // Predicated region
      $region9: #{tpu_custom_call.1} parent=5 // pred_check
        _
      $region10: #{tpu_custom_call.1} parent=5 // pred_check_branch
        %142 = sbr.rel (%p139) target = $region12
      $region11: #{tpu_custom_call.1} parent=5 // pred_region
        %s143 = ssub.s32 %s14, 1
        // Predicated region
        $region13: #{tpu_custom_call.1} parent=11 // pred_check
          %p144 = pneg %p61
        $region14: #{tpu_custom_call.1} parent=11 // pred_check_branch
          %146 = sbr.rel (%p144) target = $region16
        $region15: #{tpu_custom_call.1} parent=11 // pred_region
          _
        $region16: #{tpu_custom_call.1} parent=11 // pred_fallthru
          _
        // Predicated region
        $region17: #{tpu_custom_call.1} parent=11 // pred_check
          %p147 = pneg %p82
        $region18: #{tpu_custom_call.1} parent=11 // pred_check_branch
          %149 = sbr.rel (%p147) target = $region20
        $region19: #{tpu_custom_call.1} parent=11 // pred_region
          %s151 = ssub.s32 6144, 6144
          %152 = vsyncadd [#allocation3], %s151
          %s153 = sshll.u32 [#allocation2], 4
          %s154 = int_to_ptr.vmem [resolvable:$true] %s153
          %159 = dma.hbm_to_vmem [thread:$0]  %s2, 6144, %s154, [#allocation3], 128, 128, 8
        $region20: #{tpu_custom_call.1} parent=11 // pred_fallthru
          _
        // Predicated region
        $region21: #{tpu_custom_call.1} parent=11 // pred_check
          %p160 = pneg %p103
        $region22: #{tpu_custom_call.1} parent=11 // pred_check_branch
          %162 = sbr.rel (%p160) target = $region24
        $region23: #{tpu_custom_call.1} parent=11 // pred_region
          _
        $region24: #{tpu_custom_call.1} parent=11 // pred_fallthru
          _
      $region12: #{tpu_custom_call.1} parent=5 // pred_fallthru
        _
      %p163 = scmp.lt.s32.totalorder %s14, 2
      // Predicated region
      $region25: #{tpu_custom_call.1} parent=5 // pred_check
        %p164 = pneg %p163
      $region26: #{tpu_custom_call.1} parent=5 // pred_check_branch
        %166 = sbr.rel (%p164) target = $region28
      $region27: #{tpu_custom_call.1} parent=5 // pred_region
        // Predicated region
        $region29: #{tpu_custom_call.1} parent=27 // pred_check
          %p167 = pneg %p34
        $region30: #{tpu_custom_call.1} parent=27 // pred_check_branch
          %169 = sbr.rel (%p167) target = $region32
        $region31: #{tpu_custom_call.1} parent=27 // pred_region
          %s170 = smul.u32 2, %s14
          %p171 = scmp.lt.s32.totalorder %s170, 3
          %s172 = scalar_select %p171, %s170, 3
          %s173 = smul.addr %s172, 8
          %s174 = scalar_lea.vmem %s0, %s173
          %s175 = smul.u32 2, %s14
        $region32: #{tpu_custom_call.1} parent=27 // pred_fallthru
          _
      $region28: #{tpu_custom_call.1} parent=5 // pred_fallthru
        _
      %p176 = scmp.le.s32.totalorder 1, %s14
      %p177 = scmp.lt.s32.totalorder %s14, 3
      %p178 = pnand %p176, %p177
      %p179 = pneg %p178
      // Predicated region
      $region33: #{tpu_custom_call.1} parent=5 // pred_check
        _
      $region34: #{tpu_custom_call.1} parent=5 // pred_check_branch
        %181 = sbr.rel (%p178) target = $region36
      $region35: #{tpu_custom_call.1} parent=5 // pred_region
        %s182 = ssub.s32 %s14, 1
        // Predicated region
        $region37: #{tpu_custom_call.1} parent=35 // pred_check
          %p183 = pneg %p82
        $region38: #{tpu_custom_call.1} parent=35 // pred_check_branch
          %185 = sbr.rel (%p183) target = $region40
        $region39: #{tpu_custom_call.1} parent=35 // pred_region
          %186 = dma.done [#allocation3], 6144
        $region40: #{tpu_custom_call.1} parent=35 // pred_fallthru
          _
        %s187 = smul.u32 2, %s19
        %p188 = scmp.lt.s32.totalorder %s187, 3
        %s189 = scalar_select %p188, %s187, 3
        %s190 = smul.addr %s189, 8
        %s191 = scalar_lea.vmem %s0, %s190
        %p192 = pneg %p40
        %p193 = pneg %p37
        %p194 = pneg %p61
        %p195 = pneg %p58
        %p196 = pneg %p82
        %p197 = pneg %p79
        %p198 = pneg %p103
        %p199 = pneg %p100
        %p200 = pneg %p129
        %p201 = pneg %p126
        %s202 = sand.u32 %s116, 1
        %s203 = scalar_lea.sflag [#allocation4], %s202
        %s204 = sand.u32 %s116, 1
        %s205 = smul.addr %s204, 16
        %s206 = scalar_lea.vmem [#allocation5], %s205
        %s207 = smul.u32 2, %s19
        %p208 = scmp.lt.s32.totalorder %s207, 3
        %s209 = scalar_select %p208, %s207, 3
        %s210 = smul.addr %s209, 8
        %s211 = scalar_lea.vmem %s0, %s210
        %s212 = smul.u32 2, %s19
        %s213 = smul.u32 2, %s19
        %v214 = vld [vmem:[#allocation2] sm:$0xff]
        %v215 = vld [vmem:[#allocation2 + $0x8] sm:$0xff]
        %v216 = vld [vmem:[#allocation2 + $0x10] sm:$0xff]
        %v217 = vld [vmem:[#allocation2 + $0x18] sm:$0xff]
        %s218 = scalar_lea.vmem [#allocation2], 64
        %v219 = vld [vmem:[%s218] sm:$0xff]
        %v220 = vld [vmem:[%s218 + $0x8] sm:$0xff]
        %v221 = vld [vmem:[%s218 + $0x10] sm:$0xff]
        %v222 = vld [vmem:[%s218 + $0x18] sm:$0xff]
        %v223 = vld [vmem:[%s218 + $0x20] sm:$0xff]
        %v224 = vld [vmem:[%s218 + $0x28] sm:$0xff]
        %v225 = vld [vmem:[%s218 + $0x30] sm:$0xff]
        %v226 = vld [vmem:[%s218 + $0x38] sm:$0xff]
        %s227 = scalar_lea.vmem [#allocation2], 128
        %v228 = vld [vmem:[%s227] sm:$0xff]
        %v229 = vld [vmem:[%s227 + $0x8] sm:$0xff]
        %v230 = vld [vmem:[%s227 + $0x10] sm:$0xff]
        %v231 = vld [vmem:[%s227 + $0x18] sm:$0xff]
        %v232 = vld [vmem:[%s227 + $0x20] sm:$0xff]
        %v233 = vld [vmem:[%s227 + $0x28] sm:$0xff]
        %v234 = vld [vmem:[%s227 + $0x30] sm:$0xff]
        %v235 = vld [vmem:[%s227 + $0x38] sm:$0xff]
        %s236 = scalar_lea.vmem [#allocation2], 192
        %v237 = vld [vmem:[%s236] sm:$0xff]
        %v238 = vld [vmem:[%s236 + $0x8] sm:$0xff]
        %v239 = vld [vmem:[%s236 + $0x10] sm:$0xff]
        %v240 = vld [vmem:[%s236 + $0x18] sm:$0xff]
        %s241 = scalar_lea.vmem [#allocation2], 256
        %v242 = vld [vmem:[%s241] sm:$0xff]
        %v243 = vld [vmem:[%s241 + $0x8] sm:$0xff]
        %v244 = vld [vmem:[%s241 + $0x10] sm:$0xff]
        %v245 = vld [vmem:[%s241 + $0x18] sm:$0xff]
        %s246 = scalar_lea.vmem [#allocation2], 320
        %v247 = vld [vmem:[%s246] sm:$0xff]
        %v248 = vld [vmem:[%s246 + $0x8] sm:$0xff]
        %v249 = vld [vmem:[%s246 + $0x10] sm:$0xff]
        %v250 = vld [vmem:[%s246 + $0x18] sm:$0xff]
        %v251 = vld [vmem:[%s3] sm:$0x1]
        %v252 = vld [vmem:[%s3 + $0x1] sm:$0x1]
        %v253 = vld [vmem:[%s3 + $0x2] sm:$0x1]
        %v254 = vld [vmem:[%s3 + $0x3] sm:$0x1]
        %v255 = vld [vmem:[%s3 + $0x4] sm:$0x1]
        %v256 = vld [vmem:[%s3 + $0x5] sm:$0x1]
        %v257 = vld [vmem:[%s211] sm:$0xff]
        %v258 = vld [vmem:[%s211 + $0x8] sm:$0xff]
        %v259 = vlaneseq
        %v260 = vshrl.u32 %v259, 7
        %v261 = vsub.s32 0, %v260
        %v262 = vrot.slane %v251, %v261
        %vm263 = vcmask 261120
        %v265 = vsel %vm263, %v257, 0
        %v268 = vsel %vm263, %v258, 0
        %270 = vmatprep.subr.mxu0 0.0
        %271 = vmatpush1.msra.mxu0 %v214
        %272 = vmatprep.subr.mxu0 0.0
        %273 = vmatpush1.msra.mxu0 %v215
        %274 = vmatprep.subr.mxu0 0.0
        %275 = vmatpush1.msra.mxu0 %v216
        %276 = vmatprep.subr.mxu0 0.0
        %277 = vmatpush1.msra.mxu0 %v217
        %278 = vmatprep.subr.mxu0 0.0
        %279 = vmatpush1.msra.mxu0 0.0
        %280 = vmatprep.subr.mxu0 0.0
        %281 = vmatpush1.msra.mxu0 0.0
        %282 = vmatprep.subr.mxu0 0.0
        %283 = vmatpush1.msra.mxu0 0.0
        %284 = vmatprep.subr.mxu0 0.0
        %285 = vmatpush1.msra.mxu0 0.0
        %286 = vmatprep.subr.mxu0 0.0
        %287 = vmatpush1.msra.mxu0 0.0
        %288 = vmatprep.subr.mxu0 0.0
        %289 = vmatpush1.msra.mxu0 0.0
        %290 = vmatprep.subr.mxu0 0.0
        %291 = vmatpush1.msra.mxu0 0.0
        %292 = vmatprep.subr.mxu0 0.0
        %293 = vmatpush1.msra.mxu0 0.0
        %294 = vmatprep.subr.mxu0 0.0
        %295 = vmatpush1.msra.mxu0 0.0
        %296 = vmatprep.subr.mxu0 0.0
        %297 = vmatpush1.msra.mxu0 0.0
        %298 = vmatprep.subr.mxu0 0.0
        %299 = vmatpush1.msra.mxu0 0.0
        %300 = vmatprep.subr.mxu0 0.0
        %301 = vmatpush1.msra.mxu0 0.0
        %302 = vmatprep.subr.mxu0 0.0
        %303 = vmatpush1.msra.mxu0 0.0
        %304 = vmatprep.subr.mxu0 0.0
        %305 = vmatpush1.msra.mxu0 0.0
        %306 = vmatprep.subr.mxu0 0.0
        %307 = vmatpush1.msra.mxu0 0.0
        %308 = vmatprep.subr.mxu0 0.0
        %309 = vmatpush1.msra.mxu0 0.0
        %310 = vmatprep.subr.mxu0 0.0
        %311 = vmatpush1.msra.mxu0 0.0
        %312 = vmatprep.subr.mxu0 0.0
        %313 = vmatpush1.msra.mxu0 0.0
        %314 = vmatprep.subr.mxu0 0.0
        %315 = vmatpush1.msra.mxu0 0.0
        %316 = vmatprep.subr.mxu0 0.0
        %317 = vmatpush1.msra.mxu0 0.0
        %318 = vmatprep.subr.mxu0 0.0
        %319 = vmatpush1.msra.mxu0 0.0
        %320 = vmatprep.subr.mxu0 0.0
        %321 = vmatpush1.msra.mxu0 0.0
        %322 = vmatprep.subr.mxu0 0.0
        %323 = vmatpush1.msra.mxu0 0.0
        %324 = vmatprep.subr.mxu0 0.0
        %325 = vmatpush1.msra.mxu0 0.0
        %326 = vmatprep.subr.mxu0 0.0
        %327 = vmatpush1.msra.mxu0 0.0
        %328 = vmatprep.subr.mxu0 0.0
        %329 = vmatpush1.msra.mxu0 0.0
        %330 = vmatprep.subr.mxu0 0.0
        %331 = vmatpush1.msra.mxu0 0.0
        %332 = vmatprep.subr.mxu0 0.0
        %333 = vmatpush1.msra.mxu0 0.0
        %334 = vmatprep.mubr.f32.mxu0 0.0
        %335 = vmatmul.mubr.f32.gmra.mrb[0].mxu0 %v265
        %v336 = vpop.f32.mrb[0].mxu0
        %v337 = vadd.f32 %v262, %v336
        %v338 = vpop.f32.mrb[0].mxu0
        %339 = vmatprep.mubr.f32.mxu0 0.0
        %340 = vmatmul.mubr.f32.gmra.mrb[0].mxu0 %v268
        %v341 = vpop.f32.mrb[0].mxu0
        %v342 = vadd.f32 %v262, %v341
        %v343 = vpop.f32.mrb[0].mxu0
        %344 = vdwg.mxu0
        %v345 = vmul.f32 %v337, 0.5
        %v346 = vmul.f32 %v342, 0.5
        %v347 = vrcp.pop 1.4142135
        %v348 = vmul.f32 %v337, %v347
        %v349 = vmul.f32 %v342, %v347
        %v350 = verf.f32.pop %v348
        %v351 = verf.f32.pop %v349
        %v352 = vadd.f32 %v350, 1.0
        %v353 = vadd.f32 %v351, 1.0
        %v354 = vmul.f32 %v345, %v352
        %v355 = vmul.f32 %v346, %v353
        %v356 = vlaneseq
        %v357 = vshrl.u32 %v356, 7
        %v358 = vsub.s32 0, %v357
        %v359 = vrot.slane %v252, %v358
        %vm360 = vcmask 523264
        %v362 = vsel %vm360, %v354, 0
        %v365 = vsel %vm360, %v355, 0
        %367 = vmatprep.subr.mxu0 0.0
        %368 = vmatpush1.msra.mxu0 %v219
        %369 = vmatprep.subr.mxu0 0.0
        %370 = vmatpush1.msra.mxu0 %v220
        %371 = vmatprep.subr.mxu0 0.0
        %372 = vmatpush1.msra.mxu0 %v221
        %373 = vmatprep.subr.mxu0 0.0
        %374 = vmatpush1.msra.mxu0 %v222
        %375 = vmatprep.subr.mxu0 0.0
        %376 = vmatpush1.msra.mxu0 %v223
        %377 = vmatprep.subr.mxu0 0.0
        %378 = vmatpush1.msra.mxu0 %v224
        %379 = vmatprep.subr.mxu0 0.0
        %380 = vmatpush1.msra.mxu0 %v225
        %381 = vmatprep.subr.mxu0 0.0
        %382 = vmatpush1.msra.mxu0 %v226
        %383 = vmatprep.subr.mxu0 0.0
        %384 = vmatpush1.msra.mxu0 0.0
        %385 = vmatprep.subr.mxu0 0.0
        %386 = vmatpush1.msra.mxu0 0.0
        %387 = vmatprep.subr.mxu0 0.0
        %388 = vmatpush1.msra.mxu0 0.0
        %389 = vmatprep.subr.mxu0 0.0
        %390 = vmatpush1.msra.mxu0 0.0
        %391 = vmatprep.subr.mxu0 0.0
        %392 = vmatpush1.msra.mxu0 0.0
        %393 = vmatprep.subr.mxu0 0.0
        %394 = vmatpush1.msra.mxu0 0.0
        %395 = vmatprep.subr.mxu0 0.0
        %396 = vmatpush1.msra.mxu0 0.0
        %397 = vmatprep.subr.mxu0 0.0
        %398 = vmatpush1.msra.mxu0 0.0
        %399 = vmatprep.subr.mxu0 0.0
        %400 = vmatpush1.msra.mxu0 0.0
        %401 = vmatprep.subr.mxu0 0.0
        %402 = vmatpush1.msra.mxu0 0.0
        %403 = vmatprep.subr.mxu0 0.0
        %404 = vmatpush1.msra.mxu0 0.0
        %405 = vmatprep.subr.mxu0 0.0
        %406 = vmatpush1.msra.mxu0 0.0
        %407 = vmatprep.subr.mxu0 0.0
        %408 = vmatpush1.msra.mxu0 0.0
        %409 = vmatprep.subr.mxu0 0.0
        %410 = vmatpush1.msra.mxu0 0.0
        %411 = vmatprep.subr.mxu0 0.0
        %412 = vmatpush1.msra.mxu0 0.0
        %413 = vmatprep.subr.mxu0 0.0
        %414 = vmatpush1.msra.mxu0 0.0
        %415 = vmatprep.subr.mxu0 0.0
        %416 = vmatpush1.msra.mxu0 0.0
        %417 = vmatprep.subr.mxu0 0.0
        %418 = vmatpush1.msra.mxu0 0.0
        %419 = vmatprep.subr.mxu0 0.0
        %420 = vmatpush1.msra.mxu0 0.0
        %421 = vmatprep.subr.mxu0 0.0
        %422 = vmatpush1.msra.mxu0 0.0
        %423 = vmatprep.subr.mxu0 0.0
        %424 = vmatpush1.msra.mxu0 0.0
        %425 = vmatprep.subr.mxu0 0.0
        %426 = vmatpush1.msra.mxu0 0.0
        %427 = vmatprep.subr.mxu0 0.0
        %428 = vmatpush1.msra.mxu0 0.0
        %429 = vmatprep.subr.mxu0 0.0
        %430 = vmatpush1.msra.mxu0 0.0
        %431 = vmatprep.mubr.f32.mxu0 0.0
        %432 = vmatmul.mubr.f32.gmra.mrb[0].mxu0 %v362
        %v433 = vpop.f32.mrb[0].mxu0
        %v434 = vadd.f32 %v359, %v433
        %v435 = vpop.f32.mrb[0].mxu0
        %436 = vmatprep.mubr.f32.mxu0 0.0
        %437 = vmatmul.mubr.f32.gmra.mrb[0].mxu0 %v365
        %v438 = vpop.f32.mrb[0].mxu0
        %v439 = vadd.f32 %v359, %v438
        %v440 = vpop.f32.mrb[0].mxu0
        %441 = vdwg.mxu0
        %v442 = vmul.f32 %v434, 0.5
        %v443 = vmul.f32 %v439, 0.5
        %v444 = vmul.f32 %v434, %v347
        %v445 = vmul.f32 %v439, %v347
        %v446 = verf.f32.pop %v444
        %v447 = verf.f32.pop %v445
        %v448 = vadd.f32 %v446, 1.0
        %v449 = vadd.f32 %v447, 1.0
        %v450 = vmul.f32 %v442, %v448
        %v451 = vmul.f32 %v443, %v449
        %v452 = vlaneseq
        %v453 = vshrl.u32 %v452, 7
        %v454 = vsub.s32 0, %v453
        %v455 = vrot.slane %v253, %v454
        %v457 = vsel %vm360, %v450, 0
        %v460 = vsel %vm360, %v451, 0
        %462 = vmatprep.subr.mxu0 0.0
        %463 = vmatpush1.msra.mxu0 %v228
        %464 = vmatprep.subr.mxu0 0.0
        %465 = vmatpush1.msra.mxu0 %v229
        %466 = vmatprep.subr.mxu0 0.0
        %467 = vmatpush1.msra.mxu0 %v230
        %468 = vmatprep.subr.mxu0 0.0
        %469 = vmatpush1.msra.mxu0 %v231
        %470 = vmatprep.subr.mxu0 0.0
        %471 = vmatpush1.msra.mxu0 %v232
        %472 = vmatprep.subr.mxu0 0.0
        %473 = vmatpush1.msra.mxu0 %v233
        %474 = vmatprep.subr.mxu0 0.0
        %475 = vmatpush1.msra.mxu0 %v234
        %476 = vmatprep.subr.mxu0 0.0
        %477 = vmatpush1.msra.mxu0 %v235
        %478 = vmatprep.subr.mxu0 0.0
        %479 = vmatpush1.msra.mxu0 0.0
        %480 = vmatprep.subr.mxu0 0.0
        %481 = vmatpush1.msra.mxu0 0.0
        %482 = vmatprep.subr.mxu0 0.0
        %483 = vmatpush1.msra.mxu0 0.0
        %484 = vmatprep.subr.mxu0 0.0
        %485 = vmatpush1.msra.mxu0 0.0
        %486 = vmatprep.subr.mxu0 0.0
        %487 = vmatpush1.msra.mxu0 0.0
        %488 = vmatprep.subr.mxu0 0.0
        %489 = vmatpush1.msra.mxu0 0.0
        %490 = vmatprep.subr.mxu0 0.0
        %491 = vmatpush1.msra.mxu0 0.0
        %492 = vmatprep.subr.mxu0 0.0
        %493 = vmatpush1.msra.mxu0 0.0
        %494 = vmatprep.subr.mxu0 0.0
        %495 = vmatpush1.msra.mxu0 0.0
        %496 = vmatprep.subr.mxu0 0.0
        %497 = vmatpush1.msra.mxu0 0.0
        %498 = vmatprep.subr.mxu0 0.0
        %499 = vmatpush1.msra.mxu0 0.0
        %500 = vmatprep.subr.mxu0 0.0
        %501 = vmatpush1.msra.mxu0 0.0
        %502 = vmatprep.subr.mxu0 0.0
        %503 = vmatpush1.msra.mxu0 0.0
        %504 = vmatprep.subr.mxu0 0.0
        %505 = vmatpush1.msra.mxu0 0.0
        %506 = vmatprep.subr.mxu0 0.0
        %507 = vmatpush1.msra.mxu0 0.0
        %508 = vmatprep.subr.mxu0 0.0
        %509 = vmatpush1.msra.mxu0 0.0
        %510 = vmatprep.subr.mxu0 0.0
        %511 = vmatpush1.msra.mxu0 0.0
        %512 = vmatprep.subr.mxu0 0.0
        %513 = vmatpush1.msra.mxu0 0.0
        %514 = vmatprep.subr.mxu0 0.0
        %515 = vmatpush1.msra.mxu0 0.0
        %516 = vmatprep.subr.mxu0 0.0
        %517 = vmatpush1.msra.mxu0 0.0
        %518 = vmatprep.subr.mxu0 0.0
        %519 = vmatpush1.msra.mxu0 0.0
        %520 = vmatprep.subr.mxu0 0.0
        %521 = vmatpush1.msra.mxu0 0.0
        %522 = vmatprep.subr.mxu0 0.0
        %523 = vmatpush1.msra.mxu0 0.0
        %524 = vmatprep.subr.mxu0 0.0
        %525 = vmatpush1.msra.mxu0 0.0
        %526 = vmatprep.mubr.f32.mxu0 0.0
        %527 = vmatmul.mubr.f32.gmra.mrb[0].mxu0 %v457
        %v528 = vpop.f32.mrb[0].mxu0
        %v529 = vadd.f32 %v455, %v528
        %v530 = vpop.f32.mrb[0].mxu0
        %531 = vmatprep.mubr.f32.mxu0 0.0
        %532 = vmatmul.mubr.f32.gmra.mrb[0].mxu0 %v460
        %v533 = vpop.f32.mrb[0].mxu0
        %v534 = vadd.f32 %v455, %v533
        %v535 = vpop.f32.mrb[0].mxu0
        %536 = vdwg.mxu0
        %v537 = vmul.f32 %v529, 0.5
        %v538 = vmul.f32 %v534, 0.5
        %v539 = vmul.f32 %v529, %v347
        %v540 = vmul.f32 %v534, %v347
        %v541 = verf.f32.pop %v539
        %v542 = verf.f32.pop %v540
        %v543 = vadd.f32 %v541, 1.0
        %v544 = vadd.f32 %v542, 1.0
        %v545 = vmul.f32 %v537, %v543
        %v546 = vmul.f32 %v538, %v544
        %v547 = vld [vmem:[%s1] sm:$0xff]
        %v548 = vld [vmem:[%s1 + $0x8] sm:$0xff]
        %v549 = vld [vmem:[%s1 + $0x10] sm:$0xff]
        %v550 = vld [vmem:[%s1 + $0x18] sm:$0xff]
        %vm551 = vcmask 130048
        %v553 = vsel %vm551, %v547, 0
        %v556 = vsel %vm551, %v548, 0
        %v559 = vsel %vm551, %v549, 0
        %v562 = vsel %vm551, %v550, 0
        %564 = vmatprep.subr.mxu0 0.0
        %565 = vmatpush1.msra.mxu0 %v545
        %566 = vmatprep.subr.mxu0 0.0
        %567 = vmatpush1.msra.mxu0 %v546
        %568 = vmatprep.subr.mxu0 0.0
        %569 = vmatpush1.msra.mxu0 0.0
        %570 = vmatprep.subr.mxu0 0.0
        %571 = vmatpush1.msra.mxu0 0.0
        %572 = vmatprep.subr.mxu0 0.0
        %573 = vmatpush1.msra.mxu0 0.0
        %574 = vmatprep.subr.mxu0 0.0
        %575 = vmatpush1.msra.mxu0 0.0
        %576 = vmatprep.subr.mxu0 0.0
        %577 = vmatpush1.msra.mxu0 0.0
        %578 = vmatprep.subr.mxu0 0.0
        %579 = vmatpush1.msra.mxu0 0.0
        %580 = vmatprep.subr.mxu0 0.0
        %581 = vmatpush1.msra.mxu0 0.0
        %582 = vmatprep.subr.mxu0 0.0
        %583 = vmatpush1.msra.mxu0 0.0
        %584 = vmatprep.subr.mxu0 0.0
        %585 = vmatpush1.msra.mxu0 0.0
        %586 = vmatprep.subr.mxu0 0.0
        %587 = vmatpush1.msra.mxu0 0.0
        %588 = vmatprep.subr.mxu0 0.0
        %589 = vmatpush1.msra.mxu0 0.0
        %590 = vmatprep.subr.mxu0 0.0
        %591 = vmatpush1.msra.mxu0 0.0
        %592 = vmatprep.subr.mxu0 0.0
        %593 = vmatpush1.msra.mxu0 0.0
        %594 = vmatprep.subr.mxu0 0.0
        %595 = vmatpush1.msra.mxu0 0.0
        %596 = vmatprep.subr.mxu0 0.0
        %597 = vmatpush1.msra.mxu0 0.0
        %598 = vmatprep.subr.mxu0 0.0
        %599 = vmatpush1.msra.mxu0 0.0
        %600 = vmatprep.subr.mxu0 0.0
        %601 = vmatpush1.msra.mxu0 0.0
        %602 = vmatprep.subr.mxu0 0.0
        %603 = vmatpush1.msra.mxu0 0.0
        %604 = vmatprep.subr.mxu0 0.0
        %605 = vmatpush1.msra.mxu0 0.0
        %606 = vmatprep.subr.mxu0 0.0
        %607 = vmatpush1.msra.mxu0 0.0
        %608 = vmatprep.subr.mxu0 0.0
        %609 = vmatpush1.msra.mxu0 0.0
        %610 = vmatprep.subr.mxu0 0.0
        %611 = vmatpush1.msra.mxu0 0.0
        %612 = vmatprep.subr.mxu0 0.0
        %613 = vmatpush1.msra.mxu0 0.0
        %614 = vmatprep.subr.mxu0 0.0
        %615 = vmatpush1.msra.mxu0 0.0
        %616 = vmatprep.subr.mxu0 0.0
        %617 = vmatpush1.msra.mxu0 0.0
        %618 = vmatprep.subr.mxu0 0.0
        %619 = vmatpush1.msra.mxu0 0.0
        %620 = vmatprep.subr.mxu0 0.0
        %621 = vmatpush1.msra.mxu0 0.0
        %622 = vmatprep.subr.mxu0 0.0
        %623 = vmatpush1.msra.mxu0 0.0
        %624 = vmatprep.subr.mxu0 0.0
        %625 = vmatpush1.msra.mxu0 0.0
        %626 = vmatprep.subr.mxu0 0.0
        %627 = vmatpush1.msra.mxu0 0.0
        %628 = vmatprep.mubr.f32.mxu0 0.0
        %629 = vmatmul.mubr.f32.gmra.mrb[0].mxu0 %v553
        %v630 = vpop.f32.mrb[0].mxu0
        %v631 = vadd.f32 0.0, %v630
        %v632 = vpop.f32.mrb[0].mxu0
        %633 = vmatprep.mubr.f32.mxu0 0.0
        %634 = vmatmul.mubr.f32.gmra.mrb[0].mxu0 %v556
        %v635 = vpop.f32.mrb[0].mxu0
        %v636 = vadd.f32 0.0, %v635
        %v637 = vpop.f32.mrb[0].mxu0
        %638 = vmatprep.mubr.f32.mxu0 0.0
        %639 = vmatmul.mubr.f32.gmra.mrb[0].mxu0 %v559
        %v640 = vpop.f32.mrb[0].mxu0
        %v641 = vadd.f32 0.0, %v640
        %v642 = vpop.f32.mrb[0].mxu0
        %643 = vmatprep.mubr.f32.mxu0 0.0
        %644 = vmatmul.mubr.f32.gmra.mrb[0].mxu0 %v562
        %v645 = vpop.f32.mrb[0].mxu0
        %v646 = vadd.f32 0.0, %v645
        %v647 = vpop.f32.mrb[0].mxu0
        %648 = vdwg.mxu0
        %651 = vrot.lane.b32.xlu0 %v641, 32
        %v652 = vpop.permute.xlu0 %651
        %653 = vrot.lane.b32.xlu0 %v646, 32
        %v654 = vpop.permute.xlu0 %653
        %v657 = vsub.f32 %v631, %v652
        %v658 = vsub.f32 %v636, %v654
        %v659 = vlaneseq
        %v660 = vshrl.u32 %v659, 7
        %v661 = vsub.s32 0, %v660
        %v662 = vrot.slane %v254, %v661
        %665 = vrot.lane.b32.xlu0 %v657, 96
        %v666 = vpop.permute.xlu0 %665
        %667 = vrot.lane.b32.xlu0 %v658, 96
        %v668 = vpop.permute.xlu0 %667
        %v669 = vsel %vm263, %v666, 0
        %v671 = vsel %vm263, %v668, 0
        %673 = vmatprep.subr.mxu0 0.0
        %674 = vmatpush1.msra.mxu0 %v237
        %675 = vmatprep.subr.mxu0 0.0
        %676 = vmatpush1.msra.mxu0 %v238
        %677 = vmatprep.subr.mxu0 0.0
        %678 = vmatpush1.msra.mxu0 %v239
        %679 = vmatprep.subr.mxu0 0.0
        %680 = vmatpush1.msra.mxu0 %v240
        %681 = vmatprep.subr.mxu0 0.0
        %682 = vmatpush1.msra.mxu0 0.0
        %683 = vmatprep.subr.mxu0 0.0
        %684 = vmatpush1.msra.mxu0 0.0
        %685 = vmatprep.subr.mxu0 0.0
        %686 = vmatpush1.msra.mxu0 0.0
        %687 = vmatprep.subr.mxu0 0.0
        %688 = vmatpush1.msra.mxu0 0.0
        %689 = vmatprep.subr.mxu0 0.0
        %690 = vmatpush1.msra.mxu0 0.0
        %691 = vmatprep.subr.mxu0 0.0
        %692 = vmatpush1.msra.mxu0 0.0
        %693 = vmatprep.subr.mxu0 0.0
        %694 = vmatpush1.msra.mxu0 0.0
        %695 = vmatprep.subr.mxu0 0.0
        %696 = vmatpush1.msra.mxu0 0.0
        %697 = vmatprep.subr.mxu0 0.0
        %698 = vmatpush1.msra.mxu0 0.0
        %699 = vmatprep.subr.mxu0 0.0
        %700 = vmatpush1.msra.mxu0 0.0
        %701 = vmatprep.subr.mxu0 0.0
        %702 = vmatpush1.msra.mxu0 0.0
        %703 = vmatprep.subr.mxu0 0.0
        %704 = vmatpush1.msra.mxu0 0.0
        %705 = vmatprep.subr.mxu0 0.0
        %706 = vmatpush1.msra.mxu0 0.0
        %707 = vmatprep.subr.mxu0 0.0
        %708 = vmatpush1.msra.mxu0 0.0
        %709 = vmatprep.subr.mxu0 0.0
        %710 = vmatpush1.msra.mxu0 0.0
        %711 = vmatprep.subr.mxu0 0.0
        %712 = vmatpush1.msra.mxu0 0.0
        %713 = vmatprep.subr.mxu0 0.0
        %714 = vmatpush1.msra.mxu0 0.0
        %715 = vmatprep.subr.mxu0 0.0
        %716 = vmatpush1.msra.mxu0 0.0
        %717 = vmatprep.subr.mxu0 0.0
        %718 = vmatpush1.msra.mxu0 0.0
        %719 = vmatprep.subr.mxu0 0.0
        %720 = vmatpush1.msra.mxu0 0.0
        %721 = vmatprep.subr.mxu0 0.0
        %722 = vmatpush1.msra.mxu0 0.0
        %723 = vmatprep.subr.mxu0 0.0
        %724 = vmatpush1.msra.mxu0 0.0
        %725 = vmatprep.subr.mxu0 0.0
        %726 = vmatpush1.msra.mxu0 0.0
        %727 = vmatprep.subr.mxu0 0.0
        %728 = vmatpush1.msra.mxu0 0.0
        %729 = vmatprep.subr.mxu0 0.0
        %730 = vmatpush1.msra.mxu0 0.0
        %731 = vmatprep.subr.mxu0 0.0
        %732 = vmatpush1.msra.mxu0 0.0
        %733 = vmatprep.subr.mxu0 0.0
        %734 = vmatpush1.msra.mxu0 0.0
        %735 = vmatprep.subr.mxu0 0.0
        %736 = vmatpush1.msra.mxu0 0.0
        %737 = vmatprep.mubr.f32.mxu0 0.0
        %738 = vmatmul.mubr.f32.gmra.mrb[0].mxu0 %v669
        %v739 = vpop.f32.mrb[0].mxu0
        %v740 = vadd.f32 %v662, %v739
        %v741 = vpop.f32.mrb[0].mxu0
        %742 = vmatprep.mubr.f32.mxu0 0.0
        %743 = vmatmul.mubr.f32.gmra.mrb[0].mxu0 %v671
        %v744 = vpop.f32.mrb[0].mxu0
        %v745 = vadd.f32 %v662, %v744
        %v746 = vpop.f32.mrb[0].mxu0
        %747 = vdwg.mxu0
        %v748 = vmul.f32 %v740, 0.5
        %v749 = vmul.f32 %v745, 0.5
        %v750 = vmul.f32 %v740, %v347
        %v751 = vmul.f32 %v745, %v347
        %v752 = verf.f32.pop %v750
        %v753 = verf.f32.pop %v751
        %v754 = vadd.f32 %v752, 1.0
        %v755 = vadd.f32 %v753, 1.0
        %v756 = vmul.f32 %v748, %v754
        %v757 = vmul.f32 %v749, %v755
        %v758 = vlaneseq
        %v759 = vshrl.u32 %v758, 7
        %v760 = vsub.s32 0, %v759
        %v761 = vrot.slane %v255, %v760
        %v763 = vsel %vm263, %v756, 0
        %v766 = vsel %vm263, %v757, 0
        %768 = vmatprep.subr.mxu0 0.0
        %769 = vmatpush1.msra.mxu0 %v242
        %770 = vmatprep.subr.mxu0 0.0
        %771 = vmatpush1.msra.mxu0 %v243
        %772 = vmatprep.subr.mxu0 0.0
        %773 = vmatpush1.msra.mxu0 %v244
        %774 = vmatprep.subr.mxu0 0.0
        %775 = vmatpush1.msra.mxu0 %v245
        %776 = vmatprep.subr.mxu0 0.0
        %777 = vmatpush1.msra.mxu0 0.0
        %778 = vmatprep.subr.mxu0 0.0
        %779 = vmatpush1.msra.mxu0 0.0
        %780 = vmatprep.subr.mxu0 0.0
        %781 = vmatpush1.msra.mxu0 0.0
        %782 = vmatprep.subr.mxu0 0.0
        %783 = vmatpush1.msra.mxu0 0.0
        %784 = vmatprep.subr.mxu0 0.0
        %785 = vmatpush1.msra.mxu0 0.0
        %786 = vmatprep.subr.mxu0 0.0
        %787 = vmatpush1.msra.mxu0 0.0
        %788 = vmatprep.subr.mxu0 0.0
        %789 = vmatpush1.msra.mxu0 0.0
        %790 = vmatprep.subr.mxu0 0.0
        %791 = vmatpush1.msra.mxu0 0.0
        %792 = vmatprep.subr.mxu0 0.0
        %793 = vmatpush1.msra.mxu0 0.0
        %794 = vmatprep.subr.mxu0 0.0
        %795 = vmatpush1.msra.mxu0 0.0
        %796 = vmatprep.subr.mxu0 0.0
        %797 = vmatpush1.msra.mxu0 0.0
        %798 = vmatprep.subr.mxu0 0.0
        %799 = vmatpush1.msra.mxu0 0.0
        %800 = vmatprep.subr.mxu0 0.0
        %801 = vmatpush1.msra.mxu0 0.0
        %802 = vmatprep.subr.mxu0 0.0
        %803 = vmatpush1.msra.mxu0 0.0
        %804 = vmatprep.subr.mxu0 0.0
        %805 = vmatpush1.msra.mxu0 0.0
        %806 = vmatprep.subr.mxu0 0.0
        %807 = vmatpush1.msra.mxu0 0.0
        %808 = vmatprep.subr.mxu0 0.0
        %809 = vmatpush1.msra.mxu0 0.0
        %810 = vmatprep.subr.mxu0 0.0
        %811 = vmatpush1.msra.mxu0 0.0
        %812 = vmatprep.subr.mxu0 0.0
        %813 = vmatpush1.msra.mxu0 0.0
        %814 = vmatprep.subr.mxu0 0.0
        %815 = vmatpush1.msra.mxu0 0.0
        %816 = vmatprep.subr.mxu0 0.0
        %817 = vmatpush1.msra.mxu0 0.0
        %818 = vmatprep.subr.mxu0 0.0
        %819 = vmatpush1.msra.mxu0 0.0
        %820 = vmatprep.subr.mxu0 0.0
        %821 = vmatpush1.msra.mxu0 0.0
        %822 = vmatprep.subr.mxu0 0.0
        %823 = vmatpush1.msra.mxu0 0.0
        %824 = vmatprep.subr.mxu0 0.0
        %825 = vmatpush1.msra.mxu0 0.0
        %826 = vmatprep.subr.mxu0 0.0
        %827 = vmatpush1.msra.mxu0 0.0
        %828 = vmatprep.subr.mxu0 0.0
        %829 = vmatpush1.msra.mxu0 0.0
        %830 = vmatprep.subr.mxu0 0.0
        %831 = vmatpush1.msra.mxu0 0.0
        %832 = vmatprep.mubr.f32.mxu0 0.0
        %833 = vmatmul.mubr.f32.gmra.mrb[0].mxu0 %v763
        %v834 = vpop.f32.mrb[0].mxu0
        %v835 = vadd.f32 %v761, %v834
        %v836 = vpop.f32.mrb[0].mxu0
        %837 = vmatprep.mubr.f32.mxu0 0.0
        %838 = vmatmul.mubr.f32.gmra.mrb[0].mxu0 %v766
        %v839 = vpop.f32.mrb[0].mxu0
        %v840 = vadd.f32 %v761, %v839
        %v841 = vpop.f32.mrb[0].mxu0
        %842 = vdwg.mxu0
        %v843 = vmul.f32 %v835, 0.5
        %v844 = vmul.f32 %v840, 0.5
        %v845 = vmul.f32 %v835, %v347
        %v846 = vmul.f32 %v840, %v347
        %v847 = verf.f32.pop %v845
        %v848 = verf.f32.pop %v846
        %v849 = vadd.f32 %v847, 1.0
        %v850 = vadd.f32 %v848, 1.0
        %v851 = vmul.f32 %v843, %v849
        %v852 = vmul.f32 %v844, %v850
        %v853 = vlaneseq
        %v854 = vshrl.u32 %v853, 7
        %v855 = vsub.s32 0, %v854
        %v856 = vrot.slane %v256, %v855
        %v858 = vsel %vm263, %v851, 0
        %v861 = vsel %vm263, %v852, 0
        %863 = vmatprep.subr.mxu0 0.0
        %864 = vmatpush1.msra.mxu0 %v247
        %865 = vmatprep.subr.mxu0 0.0
        %866 = vmatpush1.msra.mxu0 %v248
        %867 = vmatprep.subr.mxu0 0.0
        %868 = vmatpush1.msra.mxu0 %v249
        %869 = vmatprep.subr.mxu0 0.0
        %870 = vmatpush1.msra.mxu0 %v250
        %871 = vmatprep.subr.mxu0 0.0
        %872 = vmatpush1.msra.mxu0 0.0
        %873 = vmatprep.subr.mxu0 0.0
        %874 = vmatpush1.msra.mxu0 0.0
        %875 = vmatprep.subr.mxu0 0.0
        %876 = vmatpush1.msra.mxu0 0.0
        %877 = vmatprep.subr.mxu0 0.0
        %878 = vmatpush1.msra.mxu0 0.0
        %879 = vmatprep.subr.mxu0 0.0
        %880 = vmatpush1.msra.mxu0 0.0
        %881 = vmatprep.subr.mxu0 0.0
        %882 = vmatpush1.msra.mxu0 0.0
        %883 = vmatprep.subr.mxu0 0.0
        %884 = vmatpush1.msra.mxu0 0.0
        %885 = vmatprep.subr.mxu0 0.0
        %886 = vmatpush1.msra.mxu0 0.0
        %887 = vmatprep.subr.mxu0 0.0
        %888 = vmatpush1.msra.mxu0 0.0
        %889 = vmatprep.subr.mxu0 0.0
        %890 = vmatpush1.msra.mxu0 0.0
        %891 = vmatprep.subr.mxu0 0.0
        %892 = vmatpush1.msra.mxu0 0.0
        %893 = vmatprep.subr.mxu0 0.0
        %894 = vmatpush1.msra.mxu0 0.0
        %895 = vmatprep.subr.mxu0 0.0
        %896 = vmatpush1.msra.mxu0 0.0
        %897 = vmatprep.subr.mxu0 0.0
        %898 = vmatpush1.msra.mxu0 0.0
        %899 = vmatprep.subr.mxu0 0.0
        %900 = vmatpush1.msra.mxu0 0.0
        %901 = vmatprep.subr.mxu0 0.0
        %902 = vmatpush1.msra.mxu0 0.0
        %903 = vmatprep.subr.mxu0 0.0
        %904 = vmatpush1.msra.mxu0 0.0
        %905 = vmatprep.subr.mxu0 0.0
        %906 = vmatpush1.msra.mxu0 0.0
        %907 = vmatprep.subr.mxu0 0.0
        %908 = vmatpush1.msra.mxu0 0.0
        %909 = vmatprep.subr.mxu0 0.0
        %910 = vmatpush1.msra.mxu0 0.0
        %911 = vmatprep.subr.mxu0 0.0
        %912 = vmatpush1.msra.mxu0 0.0
        %913 = vmatprep.subr.mxu0 0.0
        %914 = vmatpush1.msra.mxu0 0.0
        %915 = vmatprep.subr.mxu0 0.0
        %916 = vmatpush1.msra.mxu0 0.0
        %917 = vmatprep.subr.mxu0 0.0
        %918 = vmatpush1.msra.mxu0 0.0
        %919 = vmatprep.subr.mxu0 0.0
        %920 = vmatpush1.msra.mxu0 0.0
        %921 = vmatprep.subr.mxu0 0.0
        %922 = vmatpush1.msra.mxu0 0.0
        %923 = vmatprep.subr.mxu0 0.0
        %924 = vmatpush1.msra.mxu0 0.0
        %925 = vmatprep.subr.mxu0 0.0
        %926 = vmatpush1.msra.mxu0 0.0
        %927 = vmatprep.mubr.f32.mxu0 0.0
        %928 = vmatmul.mubr.f32.gmra.mrb[0].mxu0 %v858
        %v929 = vpop.f32.mrb[0].mxu0
        %v930 = vadd.f32 %v856, %v929
        %v931 = vpop.f32.mrb[0].mxu0
        %932 = vmatprep.mubr.f32.mxu0 0.0
        %933 = vmatmul.mubr.f32.gmra.mrb[0].mxu0 %v861
        %v934 = vpop.f32.mrb[0].mxu0
        %v935 = vadd.f32 %v856, %v934
        %v936 = vpop.f32.mrb[0].mxu0
        %937 = vdwg.mxu0
        %v938 = vmul.f32 %v930, 0.5
        %v939 = vmul.f32 %v935, 0.5
        %v940 = vmul.f32 %v930, %v347
        %v941 = vmul.f32 %v935, %v347
        %v942 = verf.f32.pop %v940
        %v943 = verf.f32.pop %v941
        %v944 = vadd.f32 %v942, 1.0
        %v945 = vadd.f32 %v943, 1.0
        %v946 = vmul.f32 %v938, %v944
        %v947 = vmul.f32 %v939, %v945
        %948 = vst.msk [vmem:[%s206] sm:$0xff] %vm263, %v946
        %949 = vst.msk [vmem:[%s206 + $0x8] sm:$0xff] %vm263, %v947
        %s950 = sand.u32 %s116, 1
        %s951 = scalar_lea.sflag [#allocation4], %s950
        %s952 = sand.u32 %s116, 1
        %s953 = smul.addr %s952, 16
        %s954 = scalar_lea.vmem [#allocation5], %s953
        // Predicated region
        $region41: #{tpu_custom_call.1} parent=35 // pred_check
          %p955 = pneg %p126
        $region42: #{tpu_custom_call.1} parent=35 // pred_check_branch
          %957 = sbr.rel (%p955) target = $region44
        $region43: #{tpu_custom_call.1} parent=35 // pred_region
          %s958 = smul.u32 2, %s19
          %s960 = ssub.s32 256, 256
          %961 = vsyncadd %s951, %s960
          %s962 = smul.addr %s958, 128
          %s963 = scalar_lea.hbm %s4, %s962
          %s964 = sshll.u32 %s954, 4
          %s965 = int_to_ptr.vmem [resolvable:$true] %s964
          %970 = dma.vmem_to_hbm [thread:$0]  %s965, 256, %s963, %s951, 128, 128, 8
        $region44: #{tpu_custom_call.1} parent=35 // pred_fallthru
          _
      $region36: #{tpu_custom_call.1} parent=5 // pred_fallthru
        _
      %p971 = scmp.le.s32.totalorder 2, %s14
      // Predicated region
      $region45: #{tpu_custom_call.1} parent=5 // pred_check
        %p972 = pneg %p971
      $region46: #{tpu_custom_call.1} parent=5 // pred_check_branch
        %974 = sbr.rel (%p972) target = $region48
      $region47: #{tpu_custom_call.1} parent=5 // pred_region
        %s975 = ssub.s32 %s14, 2
        // Predicated region
        $region49: #{tpu_custom_call.1} parent=47 // pred_check
          %p976 = pneg %p132
        $region50: #{tpu_custom_call.1} parent=47 // pred_check_branch
          %978 = sbr.rel (%p976) target = $region52
        $region51: #{tpu_custom_call.1} parent=47 // pred_region
          %s979 = sand.u32 %s117, 1
          %s980 = scalar_lea.sflag [#allocation4], %s979
          %s981 = sand.u32 %s117, 1
          %s982 = smul.addr %s981, 16
          %s983 = scalar_lea.vmem [#allocation5], %s982
          %984 = dma.done %s980, 256
        $region52: #{tpu_custom_call.1} parent=47 // pred_fallthru
          _
      $region48: #{tpu_custom_call.1} parent=5 // pred_fallthru
        _
    $region6: #{tpu_custom_call.1} parent=1 // loop_footer
      %s18 = sadd.s32 1, %s14
    $region7: #{tpu_custom_call.1} parent=1 // loop_footer_branch
      %13 = sbr.rel target = $region3
    $region8: #{tpu_custom_call.1} parent=1 // loop_exit
      _
    %985 = vsyncpa [#allocation3], 1
    %s986 = scalar_lea.sflag [#allocation3], 1
    %987 = vsyncpa %s986, 1
    %988 = vsyncpa [#allocation4], 1
    %s989 = scalar_lea.sflag [#allocation4], 1
    %990 = vsyncpa %s989, 1

</llo_original>
